<compile_context>
chip_gen: v5e
topology: v5e:2x2
jax: 0.10.0
libtpu: 0.0.40
codegen_flags: <defaults>
</compile_context>

<pallas_src>
import functools

import jax
import jax.numpy as jnp
from jax import lax
from jax.experimental import pallas as pl
from jax.experimental.pallas import tpu as pltpu


def conv_block_kernel(x_ref, w_ref, b_ref, o_ref, pad_ref, *,
                      KH, P, H, W, Cin, Cout, Ho, Wo, Hp, Nb, epi_dtype):
    """One batch tile (Nb images) per grid step.

    x_ref:   (Nb, H,  W*Cin)          lane-flattened NHWC input tile (compute dtype)
    w_ref:   (KH, Win*Cin, Wo*Cout)   block-Toeplitz conv weights, one slab per kh
    b_ref:   (1, Wo*Cout)             bias tiled across Wo (f32)
    o_ref:   (Nb, Hp, (Wo-1)*Cout)    W-pair-maxed rows; even-wo columns kept outside
    pad_ref: (Nb, Hin, Win*Cin)       VMEM scratch for in-kernel zero padding
    """
    Win = W + 2 * P
    L = Wo * Cout
    zdt = pad_ref.dtype

    # ---- in-kernel zero padding: only the 2P-wide halo is zeroed; the interior
    #      is fully overwritten below.  (Every step, not just step 0: with
    #      "parallel" grid sharding another TensorCore never runs program_id==0
    #      on its own scratch copy, so a first-step-only init would be unsafe.)
    if P > 0:
        pad_ref[:, :P, :] = jnp.zeros((Nb, P, Win * Cin), zdt)
        pad_ref[:, P + H:, :] = jnp.zeros((Nb, P, Win * Cin), zdt)
        pad_ref[:, P:P + H, :P * Cin] = jnp.zeros((Nb, H, P * Cin), zdt)
        pad_ref[:, P:P + H, P * Cin + W * Cin:] = jnp.zeros((Nb, H, P * Cin), zdt)
    pad_ref[:, P:P + H, P * Cin:P * Cin + W * Cin] = x_ref[...]

    # ---- conv as KH wide MXU matmuls (block-Toeplitz weights), f32 accumulation:
    #      (Nb*Ho, Win*Cin) @ (Win*Cin, Wo*Cout) per kernel row kh.
    acc = None
    for kh in range(KH):
        lhs = pad_ref[:, kh:kh + Ho, :].reshape(Nb * Ho, Win * Cin)
        d = jnp.dot(lhs, w_ref[kh], preferred_element_type=jnp.float32)
        acc = d if acc is None else acc + d
    acc = acc + b_ref[...]                                  # bias add, f32 (VPU)

    # ---- ReLU + MaxPool2d(2), all on the lane-flat (wo*Cout + co) layout ----
    act = jnp.maximum(acc, 0.0).astype(epi_dtype)           # bf16 epilogue on v6e/v7x
    act = act.reshape(Nb, Ho, L)[:, :2 * Hp, :]             # crop -> floor-mode pool
    hmax = jnp.max(act.reshape(Nb, Hp, 2, L), axis=2)       # H-pair max (2-row split)
    # W-pair max: one Cout-lane shift + max; lane-dense store, even-wo columns are
    # selected in the (fused) XLA epilogue outside the kernel.
    wmax = jnp.maximum(hmax[:, :, :L - Cout], hmax[:, :, Cout:])
    o_ref[...] = wmax.astype(o_ref.dtype)


def _padded_bytes(shape, dtype):
    """VMEM footprint including Mosaic (sublane, lane) tile padding of the last 2 dims."""
    itemsize = jnp.dtype(dtype).itemsize
    sublane = 8 * max(1, 4 // itemsize)                     # 8 for f32, 16 for bf16
    dims = list(shape)
    dims[-1] = -(-dims[-1] // 128) * 128
    if len(dims) >= 2:
        dims[-2] = -(-dims[-2] // sublane) * sublane
    n = 1
    for d in dims:
        n *= d
    return n * itemsize


def _chip_config():
    try:
        kind = jax.devices()[0].device_kind.lower()
    except Exception:
        kind = ""
    try:
        cap = int(pltpu.get_tpu_info().vmem_capacity_bytes)
    except Exception:
        cap = 64 << 20
    is_v7 = "v7" in kind
    if cap >= (100 << 20) and not is_v7:
        # v5e / v6e: 128 MiB VMEM, single TensorCore -> big tiles, no forced split.
        return {"kind": kind, "vmem_limit": 96 << 20, "budget": 80 << 20, "min_steps": 1}
    # v7x (64 MiB VMEM, 32 MiB scoped default, 2 TCs) or unknown: stay conservative,
    # prefer >=2 grid steps per TensorCore so the BlockSpec pipeline can overlap DMA.
    return {"kind": kind, "vmem_limit": 32 << 20, "budget": 24 << 20,
            "min_steps": 4 if is_v7 else 1}


def _epilogue_dtype(compute_dtype, kind):
    if jnp.dtype(compute_dtype) == jnp.dtype(jnp.float32):
        return jnp.float32                                  # exact-check path
    if ("v6" in kind) or ("v7" in kind) or ("trillium" in kind):
        return jnp.bfloat16                                 # bf16-capable VPU
    return jnp.float32                                      # v5e: no bf16 VALUs


def _pick_batch_tile(n, per_image_bytes, fixed_bytes, budget_bytes, min_steps):
    """Largest divisor of n that fits the (tile-padded) VMEM budget, preferring at
    least `min_steps` grid steps (load balance on multi-TC parts)."""
    divisors = [d for d in range(1, n + 1) if n % d == 0]
    fits = [d for d in divisors
            if fixed_bytes + d * per_image_bytes <= budget_bytes] or [1]
    preferred = [d for d in fits if n // d >= min_steps]
    if preferred:
        return max(preferred)
    return min(fits) if min_steps > 1 else max(fits)


def _toeplitz_weights(weight_oihw, Win, Wo, dtype):
    """(Cout,Cin,KH,KW) -> (KH, Win*Cin, Wo*Cout) block-Toeplitz matrices so that
    conv row ho = sum_kh  x_pad_row[ho+kh] @ W_kh,  output layout wo*Cout + co."""
    Cout, Cin, KH, KW = weight_oihw.shape
    w_khkw = jnp.transpose(weight_oihw, (2, 3, 1, 0))            # (KH, KW, Cin, Cout)
    kw = jnp.arange(Win)[:, None] - jnp.arange(Wo)[None, :]      # (Win, Wo): kw = win - wo
    valid = (kw >= 0) & (kw < KW)
    gathered = w_khkw[:, jnp.clip(kw, 0, KW - 1), :, :]          # (KH, Win, Wo, Cin, Cout)
    gathered = jnp.where(valid[None, :, :, None, None], gathered, 0.0)
    wt = jnp.transpose(gathered, (0, 1, 3, 2, 4))                # (KH, Win, Cin, Wo, Cout)
    return wt.reshape(KH, Win * Cin, Wo * Cout).astype(dtype)


def conv_block_2d(x_nchw, weight_oihw, bias, *, stride=1, padding=2,
                  compute_dtype=jnp.bfloat16, batch_tile=None):
    """Forward pass of ConvBlock2D. x_nchw: (N, Cin, H, W)."""
    assert stride == 1, "ConvBlock2D default uses stride=1"
    N, Cin, H, W = x_nchw.shape
    Cout, Cin_w, KH, KW = weight_oihw.shape
    assert Cin_w == Cin
    P = padding

    Hin, Win = H + 2 * P, W + 2 * P
    Ho, Wo = Hin - KH + 1, Win - KW + 1        # conv output size (stride 1)
    Hp, Wp = Ho // 2, Wo // 2                  # after 2x2 max pool (floor mode)
    L = Wo * Cout                              # lane-flat conv-row width

    cfg = _chip_config()
    epi_dtype = _epilogue_dtype(compute_dtype, cfg["kind"])
    out_dtype = x_nchw.dtype

    # ---- tile-padding-aware VMEM accounting -> batch tile (grid step size) ----
    per_image = (
        2 * _padded_bytes((H, W * Cin), compute_dtype)     # double-buffered input block
        + _padded_bytes((Hin, Win * Cin), compute_dtype)   # pad scratch
        + 3 * _padded_bytes((Ho, L), jnp.float32)          # f32 matmul acc / temporaries
        + _padded_bytes((Ho, L), epi_dtype)                # epilogue copy
        + 2 * _padded_bytes((Hp, L - Cout), out_dtype))    # double-buffered output block
    fixed = (2 * _padded_bytes((KH, Win * Cin, L), compute_dtype)   # weights (dbl-buffered)
             + 2 * _padded_bytes((1, L), jnp.float32))              # bias
    if batch_tile is not None:
        Nb = batch_tile
        assert N % Nb == 0
    else:
        Nb = _pick_batch_tile(N, per_image, fixed, cfg["budget"], cfg["min_steps"])

    # ---- host-side layout prep (one fused XLA pass each way) ----
    # NCHW -> lane-flattened NHWC (N, H, W*Cin): channels fastest on the lane axis.
    x_flat = jnp.transpose(x_nchw, (0, 2, 3, 1)).reshape(N, H, W * Cin)
    x_flat = x_flat.astype(compute_dtype)
    w_toep = _toeplitz_weights(weight_oihw, Win, Wo, compute_dtype)
    b_flat = jnp.tile(bias.astype(jnp.float32), Wo).reshape(1, L)   # bias at wo*Cout+co

    kernel = functools.partial(
        conv_block_kernel, KH=KH, P=P, H=H, W=W, Cin=Cin, Cout=Cout,
        Ho=Ho, Wo=Wo, Hp=Hp, Nb=Nb, epi_dtype=epi_dtype)

    out_flat = pl.pallas_call(
        kernel,
        out_shape=jax.ShapeDtypeStruct((N, Hp, L - Cout), out_dtype),
        grid_spec=pltpu.PrefetchScalarGridSpec(
            num_scalar_prefetch=0,
            grid=(N // Nb,),
            in_specs=[
                pl.BlockSpec((Nb, H, W * Cin), lambda n: (n, 0, 0)),
                pl.BlockSpec((KH, Win * Cin, L), lambda n: (0, 0, 0)),
                pl.BlockSpec((1, L), lambda n: (0, 0)),
            ],
            out_specs=pl.BlockSpec((Nb, Hp, L - Cout), lambda n: (n, 0, 0)),
            scratch_shapes=[pltpu.VMEM((Nb, Hin, Win * Cin), compute_dtype)],
        ),
        compiler_params=pltpu.CompilerParams(
            dimension_semantics=("parallel",),
            vmem_limit_bytes=cfg["vmem_limit"],
        ),
    )(x_flat, w_toep, b_flat)

    # Keep the even-wo columns (the kernel stored max(wo, wo+1) for every wo) and
    # return PyTorch NCHW; this selection fuses with the writeback read in XLA.
    pooled = out_flat.reshape(N, Hp, Wo - 1, Cout)[:, :, ::2, :][:, :, :Wp, :]
    return jnp.transpose(pooled, (0, 3, 1, 2))


if __name__ == "__main__":
    key = jax.random.PRNGKey(0)
    k_x, k_w, k_b = jax.random.split(key, 3)

    # small shapes consistent with the module's forward
    N, Cin, H, W = 2, 4, 16, 16
    Cout, K = 8, 3

    x = jax.random.normal(k_x, (N, Cin, H, W), jnp.float32)
    weight = 0.1 * jax.random.normal(k_w, (Cout, Cin, K, K), jnp.float32)
    bias = 0.1 * jax.random.normal(k_b, (Cout,), jnp.float32)

    # pure-JAX reference (same semantics as the PyTorch module, f32)
    conv = lax.conv_general_dilated(
        x, weight, window_strides=(1, 1), padding=((2, 2), (2, 2)),
        dimension_numbers=("NCHW", "OIHW", "NCHW"))
    conv = conv + bias[None, :, None, None]
    relu = jnp.maximum(conv, 0.0)
    ref = lax.reduce_window(relu, -jnp.inf, lax.max,
                            (1, 1, 2, 2), (1, 1, 2, 2), "VALID")
    expected_shape = (N, Cout, (H + 2 * 2 - K + 1) // 2, (W + 2 * 2 - K + 1) // 2)

    # 1) exact-semantics check: f32 matmul + f32 epilogue, tight tolerance
    out_f32 = jax.block_until_ready(
        conv_block_2d(x, weight, bias, compute_dtype=jnp.float32))
    assert out_f32.shape == expected_shape, (out_f32.shape, expected_shape)
    assert jnp.allclose(out_f32, ref, rtol=1e-4, atol=1e-4), "f32 path mismatch"

    # 2) default fast path: bf16 matmul inputs (f32 accumulation), chip-dependent
    #    bf16 epilogue on v6e/v7x
    out_fast = jax.block_until_ready(conv_block_2d(x, weight, bias))
    assert out_fast.shape == expected_shape, (out_fast.shape, expected_shape)
    assert jnp.allclose(out_fast, ref, rtol=5e-2, atol=6e-2), "bf16 path mismatch"

    print("KERNEL_OK")
</pallas_src>

<mosaic_0001>
module attributes {stable_mosaic.version = 11 : i64} {
  func.func @conv_block_kernel(%arg0: i32, %arg1: memref<2x16x64xf32, #tpu.memory_space<vmem>>, %arg2: memref<3x80x144xf32, #tpu.memory_space<vmem>>, %arg3: memref<1x144xf32, #tpu.memory_space<vmem>>, %arg4: memref<2x9x136xf32, #tpu.memory_space<vmem>>, %arg5: memref<2x20x80xf32, #tpu.memory_space<vmem>>) attributes {dimension_semantics = [#tpu.dimension_semantics<parallel>], iteration_bounds = array<i64: 1>, scalar_prefetch = 0 : i64, scratch_operands = 1 : i64, tpu.core_type = #tpu.core_type<tc>, window_params = [{transform_indices = @transform_0, window_bounds = array<i64: 2, 16, 64>}, {pipeline_mode = #tpu.pipeline_mode<synchronous>, transform_indices = @transform_1, window_bounds = array<i64: 3, 80, 144>}, {pipeline_mode = #tpu.pipeline_mode<synchronous>, transform_indices = @transform_2, window_bounds = array<i64: 1, 144>}, {transform_indices = @transform_3, window_bounds = array<i64: 2, 9, 136>}]} {
    %cst = arith.constant 0.000000e+00 : f32
    %0 = vector.broadcast %cst : f32 to vector<2x2x80xf32>
    %c0 = arith.constant 0 : index
    %c0_0 = arith.constant 0 : index
    %c0_1 = arith.constant 0 : index
    %1 = vector.load %arg5[%c0, %c0_0, %c0_1] : memref<2x20x80xf32, #tpu.memory_space<vmem>>, vector<2x2x80xf32>
    tpu.vector_store %arg5[%c0, %c0_0, %c0_1], %0 {strides = array<i32>} : memref<2x20x80xf32, #tpu.memory_space<vmem>>, vector<2x2x80xf32>,
    %cst_2 = arith.constant 0.000000e+00 : f32
    %2 = vector.broadcast %cst_2 : f32 to vector<2x2x80xf32>
    %c0_3 = arith.constant 0 : index
    %c18 = arith.constant 18 : index
    %c0_4 = arith.constant 0 : index
    %3 = vector.load %arg5[%c0_3, %c18, %c0_4] : memref<2x20x80xf32, #tpu.memory_space<vmem>>, vector<2x2x80xf32>
    tpu.vector_store %arg5[%c0_3, %c18, %c0_4], %2 {strides = array<i32>} : memref<2x20x80xf32, #tpu.memory_space<vmem>>, vector<2x2x80xf32>,
    %cst_5 = arith.constant 0.000000e+00 : f32
    %4 = vector.broadcast %cst_5 : f32 to vector<2x16x8xf32>
    %c0_6 = arith.constant 0 : index
    %c2 = arith.constant 2 : index
    %c0_7 = arith.constant 0 : index
    %5 = vector.load %arg5[%c0_6, %c2, %c0_7] : memref<2x20x80xf32, #tpu.memory_space<vmem>>, vector<2x16x8xf32>
    tpu.vector_store %arg5[%c0_6, %c2, %c0_7], %4 {strides = array<i32>} : memref<2x20x80xf32, #tpu.memory_space<vmem>>, vector<2x16x8xf32>,
    %cst_8 = arith.constant 0.000000e+00 : f32
    %6 = vector.broadcast %cst_8 : f32 to vector<2x16x8xf32>
    %c0_9 = arith.constant 0 : index
    %c2_10 = arith.constant 2 : index
    %c72 = arith.constant 72 : index
    %7 = vector.load %arg5[%c0_9, %c2_10, %c72] : memref<2x20x80xf32, #tpu.memory_space<vmem>>, vector<2x16x8xf32>
    tpu.vector_store %arg5[%c0_9, %c2_10, %c72], %6 {strides = array<i32>} : memref<2x20x80xf32, #tpu.memory_space<vmem>>, vector<2x16x8xf32>,
    %c0_11 = arith.constant 0 : index
    %c0_12 = arith.constant 0 : index
    %c0_13 = arith.constant 0 : index
    %8 = vector.load %arg1[%c0_11, %c0_12, %c0_13] : memref<2x16x64xf32, #tpu.memory_space<vmem>>, vector<2x16x64xf32>
    %c0_14 = arith.constant 0 : index
    %c2_15 = arith.constant 2 : index
    %c8 = arith.constant 8 : index
    %9 = vector.load %arg5[%c0_14, %c2_15, %c8] : memref<2x20x80xf32, #tpu.memory_space<vmem>>, vector<2x16x64xf32>
    tpu.vector_store %arg5[%c0_14, %c2_15, %c8], %8 {strides = array<i32>} : memref<2x20x80xf32, #tpu.memory_space<vmem>>, vector<2x16x64xf32>,
    %c0_16 = arith.constant 0 : index
    %c0_17 = arith.constant 0 : index
    %c0_18 = arith.constant 0 : index
    %10 = vector.load %arg5[%c0_16, %c0_17, %c0_18] : memref<2x20x80xf32, #tpu.memory_space<vmem>>, vector<2x18x80xf32>
    %11 = vector.shape_cast %10 : vector<2x18x80xf32> to vector<36x80xf32>
    %c0_19 = arith.constant 0 : index
    %c0_20 = arith.constant 0 : index
    %c0_21 = arith.constant 0 : index
    %12 = vector.load %arg2[%c0_19, %c0_20, %c0_21] : memref<3x80x144xf32, #tpu.memory_space<vmem>>, vector<1x80x144xf32>
    %13 = vector.shape_cast %12 : vector<1x80x144xf32> to vector<80x144xf32>
    %cst_22 = arith.constant dense<0.000000e+00> : vector<36x144xf32>
    %14 = tpu.matmul %11, %13, %cst_22 {dimension_numbers = #tpu.dot_dimension_numbers<[1], [0], [0], [1], [0, 0, 1, 1], [], []>} : vector<36x80xf32>, vector<80x144xf32>, vector<36x144xf32> -> vector<36x144xf32>
    %c0_23 = arith.constant 0 : index
    %c1 = arith.constant 1 : index
    %c0_24 = arith.constant 0 : index
    %15 = vector.load %arg5[%c0_23, %c1, %c0_24] : memref<2x20x80xf32, #tpu.memory_space<vmem>>, vector<2x18x80xf32>
    %16 = vector.shape_cast %15 : vector<2x18x80xf32> to vector<36x80xf32>
    %c1_25 = arith.constant 1 : index
    %c0_26 = arith.constant 0 : index
    %c0_27 = arith.constant 0 : index
    %17 = vector.load %arg2[%c1_25, %c0_26, %c0_27] : memref<3x80x144xf32, #tpu.memory_space<vmem>>, vector<1x80x144xf32>
    %18 = vector.shape_cast %17 : vector<1x80x144xf32> to vector<80x144xf32>
    %cst_28 = arith.constant dense<0.000000e+00> : vector<36x144xf32>
    %19 = tpu.matmul %16, %18, %cst_28 {dimension_numbers = #tpu.dot_dimension_numbers<[1], [0], [0], [1], [0, 0, 1, 1], [], []>} : vector<36x80xf32>, vector<80x144xf32>, vector<36x144xf32> -> vector<36x144xf32>
    %20 = arith.addf %14, %19 : vector<36x144xf32>
    %c0_29 = arith.constant 0 : index
    %c2_30 = arith.constant 2 : index
    %c0_31 = arith.constant 0 : index
    %21 = vector.load %arg5[%c0_29, %c2_30, %c0_31] : memref<2x20x80xf32, #tpu.memory_space<vmem>>, vector<2x18x80xf32>
    %22 = vector.shape_cast %21 : vector<2x18x80xf32> to vector<36x80xf32>
    %c2_32 = arith.constant 2 : index
    %c0_33 = arith.constant 0 : index
    %c0_34 = arith.constant 0 : index
    %23 = vector.load %arg2[%c2_32, %c0_33, %c0_34] : memref<3x80x144xf32, #tpu.memory_space<vmem>>, vector<1x80x144xf32>
    %24 = vector.shape_cast %23 : vector<1x80x144xf32> to vector<80x144xf32>
    %cst_35 = arith.constant dense<0.000000e+00> : vector<36x144xf32>
    %25 = tpu.matmul %22, %24, %cst_35 {dimension_numbers = #tpu.dot_dimension_numbers<[1], [0], [0], [1], [0, 0, 1, 1], [], []>} : vector<36x80xf32>, vector<80x144xf32>, vector<36x144xf32> -> vector<36x144xf32>
    %26 = arith.addf %20, %25 : vector<36x144xf32>
    %c0_36 = arith.constant 0 : index
    %c0_37 = arith.constant 0 : index
    %27 = vector.load %arg3[%c0_36, %c0_37] : memref<1x144xf32, #tpu.memory_space<vmem>>, vector<1x144xf32>
    %28 = vector.broadcast %27 : vector<1x144xf32> to vector<36x144xf32>
    %29 = arith.addf %26, %28 : vector<36x144xf32>
    %cst_38 = arith.constant 0.000000e+00 : f32
    %30 = vector.broadcast %cst_38 : f32 to vector<36x144xf32>
    %31 = arith.maximumf %29, %30 : vector<36x144xf32>
    %32 = vector.shape_cast %31 : vector<36x144xf32> to vector<2x18x144xf32>
    %33 = vector.shape_cast %32 : vector<2x18x144xf32> to vector<2x9x2x144xf32>
    %cst_39 = arith.constant dense<0xFF800000> : vector<2x9x144xf32>
    %34 = vector.multi_reduction <maximumf>, %33, %cst_39 [2] : vector<2x9x2x144xf32> to vector<2x9x144xf32>
    %35 = vector.extract_strided_slice %34 {offsets = [0, 0, 0], sizes = [2, 9, 136], strides = [1, 1, 1]} : vector<2x9x144xf32> to vector<2x9x136xf32>
    %36 = vector.extract_strided_slice %34 {offsets = [0, 0, 8], sizes = [2, 9, 136], strides = [1, 1, 1]} : vector<2x9x144xf32> to vector<2x9x136xf32>
    %37 = arith.maximumf %35, %36 : vector<2x9x136xf32>
    %c0_40 = arith.constant 0 : index
    %c0_41 = arith.constant 0 : index
    %c0_42 = arith.constant 0 : index
    %38 = vector.load %arg4[%c0_40, %c0_41, %c0_42] : memref<2x9x136xf32, #tpu.memory_space<vmem>>, vector<2x9x136xf32>
    tpu.vector_store %arg4[%c0_40, %c0_41, %c0_42], %37 {strides = array<i32>} : memref<2x9x136xf32, #tpu.memory_space<vmem>>, vector<2x9x136xf32>,
    return
  }
  func.func @transform_0(%arg0: i32) -> (i32, i32, i32) {
    %c0_i32 = arith.constant 0 : i32
    %c0_i32_0 = arith.constant 0 : i32
    %c0_i32_1 = arith.constant 0 : i32
    return %arg0, %c0_i32, %c0_i32_0 : i32, i32, i32
  }
  func.func @transform_1(%arg0: i32) -> (i32, i32, i32) {
    %c0_i32 = arith.constant 0 : i32
    %c0_i32_0 = arith.constant 0 : i32
    %c0_i32_1 = arith.constant 0 : i32
    %c0_i32_2 = arith.constant 0 : i32
    return %c0_i32, %c0_i32_0, %c0_i32_1 : i32, i32, i32
  }
  func.func @transform_2(%arg0: i32) -> (i32, i32) {
    %c0_i32 = arith.constant 0 : i32
    %c0_i32_0 = arith.constant 0 : i32
    %c0_i32_1 = arith.constant 0 : i32
    return %c0_i32, %c0_i32_0 : i32, i32
  }
  func.func @transform_3(%arg0: i32) -> (i32, i32, i32) {
    %c0_i32 = arith.constant 0 : i32
    %c0_i32_0 = arith.constant 0 : i32
    %c0_i32_1 = arith.constant 0 : i32
    return %arg0, %c0_i32, %c0_i32_0 : i32, i32, i32
  }
}

</mosaic_0001>

<llo_original>
// kernel: tpu_custom_call.1
$region0: #{tpu_custom_call.1}
  #allocation0 [shape = 'u32[]', space=smem, size = 0x4, offset = 0x4, fixed_abs, tag = 'smem constant byte address 0x4 - core index']
  #allocation1 [shape = 'u32[72,128]{1,0:T(1,128)}', space=vmem, size = 0x9000, scoped, tag = 'internal scratch']
  #allocation2 [shape = 'f32[2,20,80]{2,1,0:T(8,128)}', space=vmem, size = 0x6000, scoped, tag = 'scratch operand']
  %s0 = inlined_call_operand.vmem [shape: f32[2,16,64], index: 0, kind: input, shape index: {}]
  %s1 = inlined_call_operand.vmem [shape: f32[3,80,144], index: 1, kind: input, shape index: {}]
  %s2 = inlined_call_operand.vmem [shape: f32[1,144], index: 2, kind: input, shape index: {}]
  %s3 = inlined_call_operand.vmem [shape: f32[2,9,136], index: 3, kind: output, shape index: {}]
  %s4 = sld [smem:[#allocation0]]
  $region22: #{tpu_custom_call.1} parent=0
    _
  %s6 = ssub.s32 1, %s4
  %s7 = scalar_select 0, %s6, %s4
  // Predicated region
  $region2: #{tpu_custom_call.1} parent=0 // pred_check
    _
  $region3: #{tpu_custom_call.1} parent=0 // pred_check_branch
    %9 = sbr.rel (0) target = $region5
  $region4: #{tpu_custom_call.1} parent=0 // pred_region
    _
  $region5: #{tpu_custom_call.1} parent=0 // pred_fallthru
    _
  // Predicated region
  $region6: #{tpu_custom_call.1} parent=0 // pred_check
    _
  $region7: #{tpu_custom_call.1} parent=0 // pred_check_branch
    %11 = sbr.rel (0) target = $region9
  $region8: #{tpu_custom_call.1} parent=0 // pred_region
    _
  $region9: #{tpu_custom_call.1} parent=0 // pred_fallthru
    _
  // Predicated region
  $region10: #{tpu_custom_call.1} parent=0 // pred_check
    _
  $region11: #{tpu_custom_call.1} parent=0 // pred_check_branch
    %13 = sbr.rel (0) target = $region13
  $region12: #{tpu_custom_call.1} parent=0 // pred_region
    _
  $region13: #{tpu_custom_call.1} parent=0 // pred_fallthru
    _
  %vm14 = vcmask 648192
  %15 = vst.msk [vmem:[#allocation2] sm:$0x3] %vm14, 0.0
  %16 = vst.msk [vmem:[#allocation2 + $0x18] sm:$0x3] %vm14, 0.0
  %17 = vst.msk [vmem:[#allocation2 + $0x12] sm:$0x3] %vm14, 0.0
  %18 = vst.msk [vmem:[#allocation2 + $0x2a] sm:$0x3] %vm14, 0.0
  %vm19 = vcmask 64512
  %20 = vst.msk [vmem:[#allocation2 + $0x2] sm:$0xff] %vm19, 0.0
  %21 = vst.msk [vmem:[#allocation2 + $0xa] sm:$0xff] %vm19, 0.0
  %22 = vst.msk [vmem:[#allocation2 + $0x1a] sm:$0xff] %vm19, 0.0
  %23 = vst.msk [vmem:[#allocation2 + $0x22] sm:$0xff] %vm19, 0.0
  %vm24 = vcmask 654912
  %25 = vst.msk [vmem:[#allocation2 + $0x2] sm:$0xff] %vm24, 0.0
  %26 = vst.msk [vmem:[#allocation2 + $0xa] sm:$0xff] %vm24, 0.0
  %27 = vst.msk [vmem:[#allocation2 + $0x1a] sm:$0xff] %vm24, 0.0
  %28 = vst.msk [vmem:[#allocation2 + $0x22] sm:$0xff] %vm24, 0.0
  %v29 = vld [vmem:[%s0] sm:$0xff]
  %v30 = vld [vmem:[%s0 + $0x8] sm:$0xff]
  %v31 = vld [vmem:[%s0 + $0x10] sm:$0xff]
  %v32 = vld [vmem:[%s0 + $0x18] sm:$0xff]
  %37 = vrot.lane.b32.xlu0 %v29, 8
  %v38 = vpop.permute.xlu0 %37
  %39 = vrot.lane.b32.xlu0 %v30, 8
  %v40 = vpop.permute.xlu0 %39
  %41 = vrot.lane.b32.xlu0 %v31, 8
  %v42 = vpop.permute.xlu0 %41
  %43 = vrot.lane.b32.xlu0 %v32, 8
  %v44 = vpop.permute.xlu0 %43
  %vm49 = vcmask 588864
  %50 = vst.msk [vmem:[#allocation2 + $0x2] sm:$0xff] %vm49, %v38
  %51 = vst.msk [vmem:[#allocation2 + $0xa] sm:$0xff] %vm49, %v40
  %52 = vst.msk [vmem:[#allocation2 + $0x1a] sm:$0xff] %vm49, %v42
  %53 = vst.msk [vmem:[#allocation2 + $0x22] sm:$0xff] %vm49, %v44
  %v54 = vld [vmem:[#allocation2] sm:$0xff]
  %v55 = vld [vmem:[#allocation2 + $0x8] sm:$0xff]
  %v56 = vld [vmem:[#allocation2 + $0x10] sm:$0x3]
  %v57 = vld [vmem:[#allocation2 + $0x18] sm:$0xff]
  %v58 = vld [vmem:[#allocation2 + $0x20] sm:$0xff]
  %v59 = vld [vmem:[#allocation2 + $0x28] sm:$0x3]
  %v66 = vrot.slane %v54, 2
  %v67 = vrot.slane %v54, 4
  %v68 = vrot.slane %v54, 6
  %v69 = vrot.slane %v55, 2
  %v70 = vrot.slane %v55, 4
  %v71 = vrot.slane %v55, 6
  %v72 = vrot.slane %v57, 2
  %v73 = vrot.slane %v57, 4
  %v74 = vrot.slane %v57, 6
  %v75 = vrot.slane %v58, 2
  %v76 = vrot.slane %v58, 4
  %v77 = vrot.slane %v58, 6
  %v78 = vld [vmem:[%s1] sm:$0xff]
  %v79 = vld [vmem:[%s1 + $0x8] sm:$0xff]
  %v80 = vld [vmem:[%s1 + $0x10] sm:$0xff]
  %v81 = vld [vmem:[%s1 + $0x18] sm:$0xff]
  %v82 = vld [vmem:[%s1 + $0x20] sm:$0xff]
  %v83 = vld [vmem:[%s1 + $0x28] sm:$0xff]
  %v84 = vld [vmem:[%s1 + $0x30] sm:$0xff]
  %v85 = vld [vmem:[%s1 + $0x38] sm:$0xff]
  %v86 = vld [vmem:[%s1 + $0x40] sm:$0xff]
  %v87 = vld [vmem:[%s1 + $0x48] sm:$0xff]
  %v88 = vld [vmem:[%s1 + $0x50] sm:$0xff]
  %v89 = vld [vmem:[%s1 + $0x58] sm:$0xff]
  %v90 = vld [vmem:[%s1 + $0x60] sm:$0xff]
  %v91 = vld [vmem:[%s1 + $0x68] sm:$0xff]
  %v92 = vld [vmem:[%s1 + $0x70] sm:$0xff]
  %v93 = vld [vmem:[%s1 + $0x78] sm:$0xff]
  %v94 = vld [vmem:[%s1 + $0x80] sm:$0xff]
  %v95 = vld [vmem:[%s1 + $0x88] sm:$0xff]
  %v96 = vld [vmem:[%s1 + $0x90] sm:$0xff]
  %v97 = vld [vmem:[%s1 + $0x98] sm:$0xff]
  %v98 = vld [vmem:[#allocation2 + $0x1] sm:$0xff]
  %v99 = vld [vmem:[#allocation2 + $0x9] sm:$0xff]
  %v100 = vld [vmem:[#allocation2 + $0x11] sm:$0x3]
  %v101 = vld [vmem:[#allocation2 + $0x19] sm:$0xff]
  %v102 = vld [vmem:[#allocation2 + $0x21] sm:$0xff]
  %v103 = vld [vmem:[#allocation2 + $0x29] sm:$0x3]
  %v110 = vrot.slane %v98, 2
  %v111 = vrot.slane %v98, 4
  %v112 = vrot.slane %v98, 6
  %v113 = vrot.slane %v99, 2
  %v114 = vrot.slane %v99, 4
  %v115 = vrot.slane %v99, 6
  %v116 = vrot.slane %v101, 2
  %v117 = vrot.slane %v101, 4
  %v118 = vrot.slane %v101, 6
  %v119 = vrot.slane %v102, 2
  %v120 = vrot.slane %v102, 4
  %v121 = vrot.slane %v102, 6
  %s122 = scalar_lea.vmem %s1, 160
  %v123 = vld [vmem:[%s122] sm:$0xff]
  %v124 = vld [vmem:[%s122 + $0x8] sm:$0xff]
  %v125 = vld [vmem:[%s122 + $0x10] sm:$0xff]
  %v126 = vld [vmem:[%s122 + $0x18] sm:$0xff]
  %v127 = vld [vmem:[%s122 + $0x20] sm:$0xff]
  %v128 = vld [vmem:[%s122 + $0x28] sm:$0xff]
  %v129 = vld [vmem:[%s122 + $0x30] sm:$0xff]
  %v130 = vld [vmem:[%s122 + $0x38] sm:$0xff]
  %v131 = vld [vmem:[%s122 + $0x40] sm:$0xff]
  %v132 = vld [vmem:[%s122 + $0x48] sm:$0xff]
  %v133 = vld [vmem:[%s122 + $0x50] sm:$0xff]
  %v134 = vld [vmem:[%s122 + $0x58] sm:$0xff]
  %v135 = vld [vmem:[%s122 + $0x60] sm:$0xff]
  %v136 = vld [vmem:[%s122 + $0x68] sm:$0xff]
  %v137 = vld [vmem:[%s122 + $0x70] sm:$0xff]
  %v138 = vld [vmem:[%s122 + $0x78] sm:$0xff]
  %v139 = vld [vmem:[%s122 + $0x80] sm:$0xff]
  %v140 = vld [vmem:[%s122 + $0x88] sm:$0xff]
  %v141 = vld [vmem:[%s122 + $0x90] sm:$0xff]
  %v142 = vld [vmem:[%s122 + $0x98] sm:$0xff]
  %143 = vst [vmem:[#allocation1] ss:$4 sm:$0xff] %v98
  %s144 = scalar_lea.vmem [#allocation1], 1
  %145 = vst [vmem:[%s144] ss:$4 sm:$0xff] %v110
  %s146 = scalar_lea.vmem [#allocation1], 2
  %147 = vst [vmem:[%s146] ss:$4 sm:$0xff] %v111
  %s148 = scalar_lea.vmem [#allocation1], 3
  %149 = vst [vmem:[%s148] ss:$4 sm:$0xff] %v112
  %s150 = scalar_lea.vmem [#allocation1], 32
  %151 = vst [vmem:[%s150] ss:$4 sm:$0xff] %v99
  %s152 = scalar_lea.vmem [#allocation1], 33
  %153 = vst [vmem:[%s152] ss:$4 sm:$0xff] %v113
  %s154 = scalar_lea.vmem [#allocation1], 34
  %155 = vst [vmem:[%s154] ss:$4 sm:$0xff] %v114
  %s156 = scalar_lea.vmem [#allocation1], 35
  %157 = vst [vmem:[%s156] ss:$4 sm:$0xff] %v115
  %v158 = vld.sshfl [vmem:[#allocation1] sm:$0xff pattern:$0x73625140]
  %v159 = vld.sshfl [vmem:[#allocation1 + $0x20] sm:$0xff pattern:$0x73625140]
  %160 = vst [vmem:[#allocation1] ss:$4 sm:$0xff] %v100
  %161 = vst [vmem:[%s144] ss:$4 sm:$0xff] %v101
  %162 = vst [vmem:[%s146] ss:$4 sm:$0xff] %v116
  %163 = vst [vmem:[%s148] ss:$4 sm:$0xff] %v117
  %164 = vst [vmem:[%s150] ss:$4 sm:$0xff] %v118
  %165 = vst [vmem:[%s152] ss:$4 sm:$0xff] %v102
  %166 = vst [vmem:[%s154] ss:$4 sm:$0xff] %v119
  %167 = vst [vmem:[%s156] ss:$4 sm:$0xff] %v120
  %v168 = vld.sshfl [vmem:[#allocation1] sm:$0xff pattern:$0x73625140]
  %v169 = vld.sshfl [vmem:[#allocation1 + $0x20] sm:$0xff pattern:$0x73625140]
  %170 = vst [vmem:[#allocation1] ss:$4 sm:$0xff] %v121
  %171 = vst [vmem:[%s144] ss:$4 sm:$0xff] %v103
  %v172 = vld.sshfl [vmem:[#allocation1] sm:$0xff pattern:$0x73625140]
  %vm173 = vcmask 654336
  %v174 = vsel %vm173, %v158, 0
  %v176 = vsel %vm173, %v159, 0
  %v178 = vsel %vm173, %v168, 0
  %v180 = vsel %vm173, %v169, 0
  %v182 = vsel %vm173, %v172, 0
  %184 = vmatpush.msra.mxu0 0.0
  %185 = vmatpush.msra.mxu0 0.0
  %186 = vmatpush.msra.mxu0 0.0
  %187 = vmatpush.msra.mxu0 0.0
  %188 = vmatpush.msra.mxu0 0.0
  %189 = vmatpush.msra.mxu0 0.0
  %190 = vmatpush.msra.mxu0 %v141
  %191 = vmatpush.msra.mxu0 %v139
  %192 = vmatpush.msra.mxu0 %v137
  %193 = vmatpush.msra.mxu0 %v135
  %194 = vmatpush.msra.mxu0 %v133
  %195 = vmatpush.msra.mxu0 %v131
  %196 = vmatpush.msra.mxu0 %v129
  %197 = vmatpush.msra.mxu0 %v127
  %198 = vmatpush.msra.mxu0 %v125
  %199 = vmatpush.msra.mxu0 %v123
  %200 = vmatmul.f32.gmra.mxu0 %v174
  %v201 = vpop.f32.mrf.mxu0
  %v202 = vadd.f32 0.0, %v201
  %203 = vmatmul.f32.gmra.mxu0 %v176
  %v204 = vpop.f32.mrf.mxu0
  %v205 = vadd.f32 0.0, %v204
  %206 = vmatmul.f32.gmra.mxu0 %v178
  %v207 = vpop.f32.mrf.mxu0
  %v208 = vadd.f32 0.0, %v207
  %209 = vmatmul.f32.gmra.mxu0 %v180
  %v210 = vpop.f32.mrf.mxu0
  %v211 = vadd.f32 0.0, %v210
  %212 = vmatmul.f32.gmra.mxu0 %v182
  %v213 = vpop.f32.mrf.mxu0
  %v214 = vadd.f32 0.0, %v213
  %215 = vdwg.mxu0
  %216 = vmatpush.msra.mxu0 0.0
  %217 = vmatpush.msra.mxu0 0.0
  %218 = vmatpush.msra.mxu0 0.0
  %219 = vmatpush.msra.mxu0 0.0
  %220 = vmatpush.msra.mxu0 0.0
  %221 = vmatpush.msra.mxu0 0.0
  %222 = vmatpush.msra.mxu0 %v142
  %223 = vmatpush.msra.mxu0 %v140
  %224 = vmatpush.msra.mxu0 %v138
  %225 = vmatpush.msra.mxu0 %v136
  %226 = vmatpush.msra.mxu0 %v134
  %227 = vmatpush.msra.mxu0 %v132
  %228 = vmatpush.msra.mxu0 %v130
  %229 = vmatpush.msra.mxu0 %v128
  %230 = vmatpush.msra.mxu0 %v126
  %231 = vmatpush.msra.mxu0 %v124
  %232 = vmatmul.f32.gmra.mxu0 %v174
  %v233 = vpop.f32.mrf.mxu0
  %v234 = vadd.f32 0.0, %v233
  %235 = vmatmul.f32.gmra.mxu0 %v176
  %v236 = vpop.f32.mrf.mxu0
  %v237 = vadd.f32 0.0, %v236
  %238 = vmatmul.f32.gmra.mxu0 %v178
  %v239 = vpop.f32.mrf.mxu0
  %v240 = vadd.f32 0.0, %v239
  %241 = vmatmul.f32.gmra.mxu0 %v180
  %v242 = vpop.f32.mrf.mxu0
  %v243 = vadd.f32 0.0, %v242
  %244 = vmatmul.f32.gmra.mxu0 %v182
  %v245 = vpop.f32.mrf.mxu0
  %v246 = vadd.f32 0.0, %v245
  %247 = vdwg.mxu0
  %248 = vst [vmem:[#allocation1] ss:$4 sm:$0xff] %v54
  %s249 = scalar_lea.vmem [#allocation1], 1
  %250 = vst [vmem:[%s249] ss:$4 sm:$0xff] %v66
  %s251 = scalar_lea.vmem [#allocation1], 2
  %252 = vst [vmem:[%s251] ss:$4 sm:$0xff] %v67
  %s253 = scalar_lea.vmem [#allocation1], 3
  %254 = vst [vmem:[%s253] ss:$4 sm:$0xff] %v68
  %s255 = scalar_lea.vmem [#allocation1], 32
  %256 = vst [vmem:[%s255] ss:$4 sm:$0xff] %v55
  %s257 = scalar_lea.vmem [#allocation1], 33
  %258 = vst [vmem:[%s257] ss:$4 sm:$0xff] %v69
  %s259 = scalar_lea.vmem [#allocation1], 34
  %260 = vst [vmem:[%s259] ss:$4 sm:$0xff] %v70
  %s261 = scalar_lea.vmem [#allocation1], 35
  %262 = vst [vmem:[%s261] ss:$4 sm:$0xff] %v71
  %v263 = vld.sshfl [vmem:[#allocation1] sm:$0xff pattern:$0x73625140]
  %v264 = vld.sshfl [vmem:[#allocation1 + $0x20] sm:$0xff pattern:$0x73625140]
  %265 = vst [vmem:[#allocation1] ss:$4 sm:$0xff] %v56
  %266 = vst [vmem:[%s249] ss:$4 sm:$0xff] %v57
  %267 = vst [vmem:[%s251] ss:$4 sm:$0xff] %v72
  %268 = vst [vmem:[%s253] ss:$4 sm:$0xff] %v73
  %269 = vst [vmem:[%s255] ss:$4 sm:$0xff] %v74
  %270 = vst [vmem:[%s257] ss:$4 sm:$0xff] %v58
  %271 = vst [vmem:[%s259] ss:$4 sm:$0xff] %v75
  %272 = vst [vmem:[%s261] ss:$4 sm:$0xff] %v76
  %v273 = vld.sshfl [vmem:[#allocation1] sm:$0xff pattern:$0x73625140]
  %v274 = vld.sshfl [vmem:[#allocation1 + $0x20] sm:$0xff pattern:$0x73625140]
  %275 = vst [vmem:[#allocation1] ss:$4 sm:$0xff] %v77
  %276 = vst [vmem:[%s249] ss:$4 sm:$0xff] %v59
  %v277 = vld.sshfl [vmem:[#allocation1] sm:$0xff pattern:$0x73625140]
  %v278 = vsel %vm173, %v263, 0
  %v280 = vsel %vm173, %v264, 0
  %v282 = vsel %vm173, %v273, 0
  %v284 = vsel %vm173, %v274, 0
  %v286 = vsel %vm173, %v277, 0
  %288 = vmatpush.msra.mxu0 0.0
  %289 = vmatpush.msra.mxu0 0.0
  %290 = vmatpush.msra.mxu0 0.0
  %291 = vmatpush.msra.mxu0 0.0
  %292 = vmatpush.msra.mxu0 0.0
  %293 = vmatpush.msra.mxu0 0.0
  %294 = vmatpush.msra.mxu0 %v96
  %295 = vmatpush.msra.mxu0 %v94
  %296 = vmatpush.msra.mxu0 %v92
  %297 = vmatpush.msra.mxu0 %v90
  %298 = vmatpush.msra.mxu0 %v88
  %299 = vmatpush.msra.mxu0 %v86
  %300 = vmatpush.msra.mxu0 %v84
  %301 = vmatpush.msra.mxu0 %v82
  %302 = vmatpush.msra.mxu0 %v80
  %303 = vmatpush.msra.mxu0 %v78
  %304 = vmatmul.f32.gmra.mxu0 %v278
  %v305 = vpop.f32.mrf.mxu0
  %v306 = vadd.f32 %v202, %v305
  %307 = vmatmul.f32.gmra.mxu0 %v280
  %v308 = vpop.f32.mrf.mxu0
  %v309 = vadd.f32 %v205, %v308
  %310 = vmatmul.f32.gmra.mxu0 %v282
  %v311 = vpop.f32.mrf.mxu0
  %v312 = vadd.f32 %v208, %v311
  %313 = vmatmul.f32.gmra.mxu0 %v284
  %v314 = vpop.f32.mrf.mxu0
  %v315 = vadd.f32 %v211, %v314
  %316 = vmatmul.f32.gmra.mxu0 %v286
  %v317 = vpop.f32.mrf.mxu0
  %v318 = vadd.f32 %v214, %v317
  %319 = vdwg.mxu0
  %320 = vmatpush.msra.mxu0 0.0
  %321 = vmatpush.msra.mxu0 0.0
  %322 = vmatpush.msra.mxu0 0.0
  %323 = vmatpush.msra.mxu0 0.0
  %324 = vmatpush.msra.mxu0 0.0
  %325 = vmatpush.msra.mxu0 0.0
  %326 = vmatpush.msra.mxu0 %v97
  %327 = vmatpush.msra.mxu0 %v95
  %328 = vmatpush.msra.mxu0 %v93
  %329 = vmatpush.msra.mxu0 %v91
  %330 = vmatpush.msra.mxu0 %v89
  %331 = vmatpush.msra.mxu0 %v87
  %332 = vmatpush.msra.mxu0 %v85
  %333 = vmatpush.msra.mxu0 %v83
  %334 = vmatpush.msra.mxu0 %v81
  %335 = vmatpush.msra.mxu0 %v79
  %336 = vmatmul.f32.gmra.mxu0 %v278
  %v337 = vpop.f32.mrf.mxu0
  %v338 = vadd.f32 %v234, %v337
  %339 = vmatmul.f32.gmra.mxu0 %v280
  %v340 = vpop.f32.mrf.mxu0
  %v341 = vadd.f32 %v237, %v340
  %342 = vmatmul.f32.gmra.mxu0 %v282
  %v343 = vpop.f32.mrf.mxu0
  %v344 = vadd.f32 %v240, %v343
  %345 = vmatmul.f32.gmra.mxu0 %v284
  %v346 = vpop.f32.mrf.mxu0
  %v347 = vadd.f32 %v243, %v346
  %348 = vmatmul.f32.gmra.mxu0 %v286
  %v349 = vpop.f32.mrf.mxu0
  %v350 = vadd.f32 %v246, %v349
  %351 = vdwg.mxu0
  %v352 = vld [vmem:[#allocation2 + $0x2] sm:$0xff]
  %v353 = vld [vmem:[#allocation2 + $0xa] sm:$0xff]
  %v354 = vld [vmem:[#allocation2 + $0x12] sm:$0x3]
  %v355 = vld [vmem:[#allocation2 + $0x1a] sm:$0xff]
  %v356 = vld [vmem:[#allocation2 + $0x22] sm:$0xff]
  %v357 = vld [vmem:[#allocation2 + $0x2a] sm:$0x3]
  %v364 = vrot.slane %v352, 2
  %v365 = vrot.slane %v352, 4
  %v366 = vrot.slane %v352, 6
  %v367 = vrot.slane %v353, 2
  %v368 = vrot.slane %v353, 4
  %v369 = vrot.slane %v353, 6
  %v370 = vrot.slane %v355, 2
  %v371 = vrot.slane %v355, 4
  %v372 = vrot.slane %v355, 6
  %v373 = vrot.slane %v356, 2
  %v374 = vrot.slane %v356, 4
  %v375 = vrot.slane %v356, 6
  %s376 = scalar_lea.vmem %s1, 320
  %v377 = vld [vmem:[%s376] sm:$0xff]
  %v378 = vld [vmem:[%s376 + $0x8] sm:$0xff]
  %v379 = vld [vmem:[%s376 + $0x10] sm:$0xff]
  %v380 = vld [vmem:[%s376 + $0x18] sm:$0xff]
  %v381 = vld [vmem:[%s376 + $0x20] sm:$0xff]
  %v382 = vld [vmem:[%s376 + $0x28] sm:$0xff]
  %v383 = vld [vmem:[%s376 + $0x30] sm:$0xff]
  %v384 = vld [vmem:[%s376 + $0x38] sm:$0xff]
  %v385 = vld [vmem:[%s376 + $0x40] sm:$0xff]
  %v386 = vld [vmem:[%s376 + $0x48] sm:$0xff]
  %v387 = vld [vmem:[%s376 + $0x50] sm:$0xff]
  %v388 = vld [vmem:[%s376 + $0x58] sm:$0xff]
  %v389 = vld [vmem:[%s376 + $0x60] sm:$0xff]
  %v390 = vld [vmem:[%s376 + $0x68] sm:$0xff]
  %v391 = vld [vmem:[%s376 + $0x70] sm:$0xff]
  %v392 = vld [vmem:[%s376 + $0x78] sm:$0xff]
  %v393 = vld [vmem:[%s376 + $0x80] sm:$0xff]
  %v394 = vld [vmem:[%s376 + $0x88] sm:$0xff]
  %v395 = vld [vmem:[%s376 + $0x90] sm:$0xff]
  %v396 = vld [vmem:[%s376 + $0x98] sm:$0xff]
  %397 = vst [vmem:[#allocation1] ss:$4 sm:$0xff] %v352
  %s398 = scalar_lea.vmem [#allocation1], 1
  %399 = vst [vmem:[%s398] ss:$4 sm:$0xff] %v364
  %s400 = scalar_lea.vmem [#allocation1], 2
  %401 = vst [vmem:[%s400] ss:$4 sm:$0xff] %v365
  %s402 = scalar_lea.vmem [#allocation1], 3
  %403 = vst [vmem:[%s402] ss:$4 sm:$0xff] %v366
  %s404 = scalar_lea.vmem [#allocation1], 32
  %405 = vst [vmem:[%s404] ss:$4 sm:$0xff] %v353
  %s406 = scalar_lea.vmem [#allocation1], 33
  %407 = vst [vmem:[%s406] ss:$4 sm:$0xff] %v367
  %s408 = scalar_lea.vmem [#allocation1], 34
  %409 = vst [vmem:[%s408] ss:$4 sm:$0xff] %v368
  %s410 = scalar_lea.vmem [#allocation1], 35
  %411 = vst [vmem:[%s410] ss:$4 sm:$0xff] %v369
  %v412 = vld.sshfl [vmem:[#allocation1] sm:$0xff pattern:$0x73625140]
  %v413 = vld.sshfl [vmem:[#allocation1 + $0x20] sm:$0xff pattern:$0x73625140]
  %414 = vst [vmem:[#allocation1] ss:$4 sm:$0xff] %v354
  %415 = vst [vmem:[%s398] ss:$4 sm:$0xff] %v355
  %416 = vst [vmem:[%s400] ss:$4 sm:$0xff] %v370
  %417 = vst [vmem:[%s402] ss:$4 sm:$0xff] %v371
  %418 = vst [vmem:[%s404] ss:$4 sm:$0xff] %v372
  %419 = vst [vmem:[%s406] ss:$4 sm:$0xff] %v356
  %420 = vst [vmem:[%s408] ss:$4 sm:$0xff] %v373
  %421 = vst [vmem:[%s410] ss:$4 sm:$0xff] %v374
  %v422 = vld.sshfl [vmem:[#allocation1] sm:$0xff pattern:$0x73625140]
  %v423 = vld.sshfl [vmem:[#allocation1 + $0x20] sm:$0xff pattern:$0x73625140]
  %424 = vst [vmem:[#allocation1] ss:$4 sm:$0xff] %v375
  %425 = vst [vmem:[%s398] ss:$4 sm:$0xff] %v357
  %v426 = vld.sshfl [vmem:[#allocation1] sm:$0xff pattern:$0x73625140]
  %v427 = vsel %vm173, %v412, 0
  %v429 = vsel %vm173, %v413, 0
  %v431 = vsel %vm173, %v422, 0
  %v433 = vsel %vm173, %v423, 0
  %v435 = vsel %vm173, %v426, 0
  %437 = vmatpush.msra.mxu0 0.0
  %438 = vmatpush.msra.mxu0 0.0
  %439 = vmatpush.msra.mxu0 0.0
  %440 = vmatpush.msra.mxu0 0.0
  %441 = vmatpush.msra.mxu0 0.0
  %442 = vmatpush.msra.mxu0 0.0
  %443 = vmatpush.msra.mxu0 %v395
  %444 = vmatpush.msra.mxu0 %v393
  %445 = vmatpush.msra.mxu0 %v391
  %446 = vmatpush.msra.mxu0 %v389
  %447 = vmatpush.msra.mxu0 %v387
  %448 = vmatpush.msra.mxu0 %v385
  %449 = vmatpush.msra.mxu0 %v383
  %450 = vmatpush.msra.mxu0 %v381
  %451 = vmatpush.msra.mxu0 %v379
  %452 = vmatpush.msra.mxu0 %v377
  %453 = vmatmul.f32.gmra.mxu0 %v427
  %v454 = vpop.f32.mrf.mxu0
  %v455 = vadd.f32 0.0, %v454
  %456 = vmatmul.f32.gmra.mxu0 %v429
  %v457 = vpop.f32.mrf.mxu0
  %v458 = vadd.f32 0.0, %v457
  %459 = vmatmul.f32.gmra.mxu0 %v431
  %v460 = vpop.f32.mrf.mxu0
  %v461 = vadd.f32 0.0, %v460
  %462 = vmatmul.f32.gmra.mxu0 %v433
  %v463 = vpop.f32.mrf.mxu0
  %v464 = vadd.f32 0.0, %v463
  %465 = vmatmul.f32.gmra.mxu0 %v435
  %v466 = vpop.f32.mrf.mxu0
  %v467 = vadd.f32 0.0, %v466
  %468 = vdwg.mxu0
  %469 = vmatpush.msra.mxu0 0.0
  %470 = vmatpush.msra.mxu0 0.0
  %471 = vmatpush.msra.mxu0 0.0
  %472 = vmatpush.msra.mxu0 0.0
  %473 = vmatpush.msra.mxu0 0.0
  %474 = vmatpush.msra.mxu0 0.0
  %475 = vmatpush.msra.mxu0 %v396
  %476 = vmatpush.msra.mxu0 %v394
  %477 = vmatpush.msra.mxu0 %v392
  %478 = vmatpush.msra.mxu0 %v390
  %479 = vmatpush.msra.mxu0 %v388
  %480 = vmatpush.msra.mxu0 %v386
  %481 = vmatpush.msra.mxu0 %v384
  %482 = vmatpush.msra.mxu0 %v382
  %483 = vmatpush.msra.mxu0 %v380
  %484 = vmatpush.msra.mxu0 %v378
  %485 = vmatmul.f32.gmra.mxu0 %v427
  %v486 = vpop.f32.mrf.mxu0
  %v487 = vadd.f32 0.0, %v486
  %488 = vmatmul.f32.gmra.mxu0 %v429
  %v489 = vpop.f32.mrf.mxu0
  %v490 = vadd.f32 0.0, %v489
  %491 = vmatmul.f32.gmra.mxu0 %v431
  %v492 = vpop.f32.mrf.mxu0
  %v493 = vadd.f32 0.0, %v492
  %494 = vmatmul.f32.gmra.mxu0 %v433
  %v495 = vpop.f32.mrf.mxu0
  %v496 = vadd.f32 0.0, %v495
  %497 = vmatmul.f32.gmra.mxu0 %v435
  %v498 = vpop.f32.mrf.mxu0
  %v499 = vadd.f32 0.0, %v498
  %500 = vdwg.mxu0
  %v501 = vadd.f32 %v306, %v455
  %v502 = vadd.f32 %v338, %v487
  %v503 = vadd.f32 %v309, %v458
  %v504 = vadd.f32 %v341, %v490
  %v505 = vadd.f32 %v312, %v461
  %v506 = vadd.f32 %v344, %v493
  %v507 = vadd.f32 %v315, %v464
  %v508 = vadd.f32 %v347, %v496
  %v509 = vadd.f32 %v318, %v467
  %v510 = vadd.f32 %v350, %v499
  %v511 = vld [vmem:[%s2] sm:$0x3]
  %v513 = vperm.slane %v511, 0
  %v514 = vperm.slane %v511, 1
  %v517 = vadd.f32 %v501, %v513
  %v518 = vadd.f32 %v502, %v514
  %v519 = vadd.f32 %v503, %v513
  %v520 = vadd.f32 %v504, %v514
  %v521 = vadd.f32 %v505, %v513
  %v522 = vadd.f32 %v506, %v514
  %v523 = vadd.f32 %v507, %v513
  %v524 = vadd.f32 %v508, %v514
  %v525 = vadd.f32 %v509, %v513
  %v526 = vadd.f32 %v510, %v514
  %v527 = vmax.f32 %v517, 0.0
  %v528 = vmax.f32 %v518, 0.0
  %v529 = vmax.f32 %v519, 0.0
  %v530 = vmax.f32 %v520, 0.0
  %v531 = vmax.f32 %v521, 0.0
  %v532 = vmax.f32 %v522, 0.0
  %v533 = vmax.f32 %v523, 0.0
  %v534 = vmax.f32 %v524, 0.0
  %v535 = vmax.f32 %v525, 0.0
  %v536 = vmax.f32 %v526, 0.0
  %v547 = vrot.slane %v528, 6
  %v548 = vrot.slane %v530, 6
  %v549 = vrot.slane %v532, 6
  %v550 = vrot.slane %v534, 6
  %v551 = vrot.slane %v536, 6
  %vm552 = vcmask 1041408
  %v553 = vsel %vm552, %v527, %v547
  %vm554 = vcmask 1043458
  %v555 = vsel %vm554, %v527, %v547
  %v556 = vrot.slane %v555, 2
  %vm557 = vcmask 1045508
  %v558 = vsel %vm557, %v527, %v547
  %v559 = vrot.slane %v558, 4
  %vm560 = vcmask 1045504
  %v561 = vsel %vm560, %v547, %v527
  %v562 = vrot.slane %v561, 6
  %v563 = vsel %vm552, %v529, %v548
  %v564 = vsel %vm554, %v529, %v548
  %v565 = vrot.slane %v564, 2
  %v566 = vsel %vm557, %v529, %v548
  %v567 = vrot.slane %v566, 4
  %v568 = vsel %vm560, %v548, %v529
  %v569 = vrot.slane %v568, 6
  %v570 = vsel %vm552, %v531, %v549
  %v571 = vsel %vm554, %v531, %v549
  %v572 = vrot.slane %v571, 2
  %v573 = vsel %vm557, %v531, %v549
  %v574 = vrot.slane %v573, 4
  %v575 = vsel %vm560, %v549, %v531
  %v576 = vrot.slane %v575, 6
  %v577 = vsel %vm552, %v533, %v550
  %v578 = vsel %vm554, %v533, %v550
  %v579 = vrot.slane %v578, 2
  %v580 = vsel %vm557, %v533, %v550
  %v581 = vrot.slane %v580, 4
  %v582 = vsel %vm560, %v550, %v533
  %v583 = vrot.slane %v582, 6
  %v584 = vsel %vm552, %v535, %v551
  %v585 = vsel %vm554, %v535, %v551
  %v586 = vrot.slane %v585, 2
  %587 = vst [vmem:[#allocation1] ss:$4 sm:$0xff] %v553
  %v588 = vld.sshfl [vmem:[#allocation1] sm:$0xff pattern:$0x73625140]
  %v589 = vld.sshfl [vmem:[#allocation1 + $0x8] sm:$0xff pattern:$0x73625140]
  %s590 = scalar_lea.vmem [#allocation1], 32
  %591 = vst [vmem:[%s590] ss:$4 sm:$0xff] %v556
  %v592 = vld.sshfl [vmem:[#allocation1 + $0x20] sm:$0xff pattern:$0x73625140]
  %v593 = vld.sshfl [vmem:[#allocation1 + $0x28] sm:$0xff pattern:$0x73625140]
  %594 = vst [vmem:[#allocation1] ss:$4 sm:$0xff] %v559
  %v595 = vld.sshfl [vmem:[#allocation1] sm:$0xff pattern:$0x73625140]
  %v596 = vld.sshfl [vmem:[#allocation1 + $0x8] sm:$0xff pattern:$0x73625140]
  %597 = vst [vmem:[%s590] ss:$4 sm:$0xff] %v562
  %v598 = vld.sshfl [vmem:[#allocation1 + $0x20] sm:$0xff pattern:$0x73625140]
  %v599 = vld.sshfl [vmem:[#allocation1 + $0x28] sm:$0xff pattern:$0x73625140]
  %600 = vst [vmem:[#allocation1] ss:$4 sm:$0xff] %v563
  %v601 = vld.sshfl [vmem:[#allocation1] sm:$0xff pattern:$0x73625140]
  %v602 = vld.sshfl [vmem:[#allocation1 + $0x8] sm:$0xff pattern:$0x73625140]
  %603 = vst [vmem:[%s590] ss:$4 sm:$0xff] %v565
  %v604 = vld.sshfl [vmem:[#allocation1 + $0x20] sm:$0xff pattern:$0x73625140]
  %v605 = vld.sshfl [vmem:[#allocation1 + $0x28] sm:$0xff pattern:$0x73625140]
  %606 = vst [vmem:[#allocation1] ss:$4 sm:$0xff] %v567
  %v607 = vld.sshfl [vmem:[#allocation1] sm:$0xff pattern:$0x73625140]
  %v608 = vld.sshfl [vmem:[#allocation1 + $0x8] sm:$0xff pattern:$0x73625140]
  %609 = vst [vmem:[%s590] ss:$4 sm:$0xff] %v569
  %v610 = vld.sshfl [vmem:[#allocation1 + $0x20] sm:$0xff pattern:$0x73625140]
  %v611 = vld.sshfl [vmem:[#allocation1 + $0x28] sm:$0xff pattern:$0x73625140]
  %612 = vst [vmem:[#allocation1] ss:$4 sm:$0xff] %v570
  %v613 = vld.sshfl [vmem:[#allocation1] sm:$0xff pattern:$0x73625140]
  %v614 = vld.sshfl [vmem:[#allocation1 + $0x8] sm:$0xff pattern:$0x73625140]
  %615 = vst [vmem:[%s590] ss:$4 sm:$0xff] %v572
  %v616 = vld.sshfl [vmem:[#allocation1 + $0x20] sm:$0xff pattern:$0x73625140]
  %v617 = vld.sshfl [vmem:[#allocation1 + $0x28] sm:$0xff pattern:$0x73625140]
  %618 = vst [vmem:[#allocation1] ss:$4 sm:$0xff] %v574
  %v619 = vld.sshfl [vmem:[#allocation1] sm:$0xff pattern:$0x73625140]
  %v620 = vld.sshfl [vmem:[#allocation1 + $0x8] sm:$0xff pattern:$0x73625140]
  %621 = vst [vmem:[%s590] ss:$4 sm:$0xff] %v576
  %v622 = vld.sshfl [vmem:[#allocation1 + $0x20] sm:$0xff pattern:$0x73625140]
  %v623 = vld.sshfl [vmem:[#allocation1 + $0x28] sm:$0xff pattern:$0x73625140]
  %624 = vst [vmem:[#allocation1] ss:$4 sm:$0xff] %v577
  %v625 = vld.sshfl [vmem:[#allocation1] sm:$0xff pattern:$0x73625140]
  %v626 = vld.sshfl [vmem:[#allocation1 + $0x8] sm:$0xff pattern:$0x73625140]
  %627 = vst [vmem:[%s590] ss:$4 sm:$0xff] %v579
  %v628 = vld.sshfl [vmem:[#allocation1 + $0x20] sm:$0xff pattern:$0x73625140]
  %v629 = vld.sshfl [vmem:[#allocation1 + $0x28] sm:$0xff pattern:$0x73625140]
  %630 = vst [vmem:[#allocation1] ss:$4 sm:$0xff] %v581
  %v631 = vld.sshfl [vmem:[#allocation1] sm:$0xff pattern:$0x73625140]
  %v632 = vld.sshfl [vmem:[#allocation1 + $0x8] sm:$0xff pattern:$0x73625140]
  %633 = vst [vmem:[%s590] ss:$4 sm:$0xff] %v583
  %v634 = vld.sshfl [vmem:[#allocation1 + $0x20] sm:$0xff pattern:$0x73625140]
  %v635 = vld.sshfl [vmem:[#allocation1 + $0x28] sm:$0xff pattern:$0x73625140]
  %636 = vst [vmem:[#allocation1] ss:$4 sm:$0xff] %v584
  %v637 = vld.sshfl [vmem:[#allocation1] sm:$0xff pattern:$0x73625140]
  %v638 = vld.sshfl [vmem:[#allocation1 + $0x8] sm:$0xff pattern:$0x73625140]
  %639 = vst [vmem:[%s590] ss:$4 sm:$0xff] %v586
  %v640 = vld.sshfl [vmem:[#allocation1 + $0x20] sm:$0xff pattern:$0x73625140]
  %v641 = vld.sshfl [vmem:[#allocation1 + $0x28] sm:$0xff pattern:$0x73625140]
  %v678 = vsel %vm552, %v588, -inf
  %v679 = vrot.slane %v678, 4
  %v680 = vmax.f32 %v678, %v679
  %v681 = vrot.slane %v680, 2
  %v682 = vmax.f32 %v680, %v681
  %v683 = vrot.slane %v682, 1
  %v684 = vmax.f32 %v682, %v683
  %vm685 = vcmask 123904
  %v686 = vsel %vm685, %v589, -inf
  %v687 = vrot.slane %v686, 4
  %v688 = vmax.f32 %v686, %v687
  %v689 = vrot.slane %v688, 2
  %v690 = vmax.f32 %v688, %v689
  %v691 = vrot.slane %v690, 1
  %v692 = vmax.f32 %v690, %v691
  %v693 = vsel %vm552, %v592, -inf
  %v694 = vrot.slane %v693, 4
  %v695 = vmax.f32 %v693, %v694
  %v696 = vrot.slane %v695, 2
  %v697 = vmax.f32 %v695, %v696
  %v698 = vrot.slane %v697, 1
  %v699 = vmax.f32 %v697, %v698
  %v700 = vsel %vm685, %v593, -inf
  %v701 = vrot.slane %v700, 4
  %v702 = vmax.f32 %v700, %v701
  %v703 = vrot.slane %v702, 2
  %v704 = vmax.f32 %v702, %v703
  %v705 = vrot.slane %v704, 1
  %v706 = vmax.f32 %v704, %v705
  %v707 = vsel %vm552, %v595, -inf
  %v708 = vrot.slane %v707, 4
  %v709 = vmax.f32 %v707, %v708
  %v710 = vrot.slane %v709, 2
  %v711 = vmax.f32 %v709, %v710
  %v712 = vrot.slane %v711, 1
  %v713 = vmax.f32 %v711, %v712
  %v714 = vsel %vm685, %v596, -inf
  %v715 = vrot.slane %v714, 4
  %v716 = vmax.f32 %v714, %v715
  %v717 = vrot.slane %v716, 2
  %v718 = vmax.f32 %v716, %v717
  %v719 = vrot.slane %v718, 1
  %v720 = vmax.f32 %v718, %v719
  %v721 = vsel %vm552, %v598, -inf
  %v722 = vrot.slane %v721, 4
  %v723 = vmax.f32 %v721, %v722
  %v724 = vrot.slane %v723, 2
  %v725 = vmax.f32 %v723, %v724
  %v726 = vrot.slane %v725, 1
  %v727 = vmax.f32 %v725, %v726
  %v728 = vsel %vm685, %v599, -inf
  %v729 = vrot.slane %v728, 4
  %v730 = vmax.f32 %v728, %v729
  %v731 = vrot.slane %v730, 2
  %v732 = vmax.f32 %v730, %v731
  %v733 = vrot.slane %v732, 1
  %v734 = vmax.f32 %v732, %v733
  %v735 = vsel %vm552, %v601, -inf
  %v736 = vrot.slane %v735, 4
  %v737 = vmax.f32 %v735, %v736
  %v738 = vrot.slane %v737, 2
  %v739 = vmax.f32 %v737, %v738
  %v740 = vrot.slane %v739, 1
  %v741 = vmax.f32 %v739, %v740
  %v742 = vsel %vm685, %v602, -inf
  %v743 = vrot.slane %v742, 4
  %v744 = vmax.f32 %v742, %v743
  %v745 = vrot.slane %v744, 2
  %v746 = vmax.f32 %v744, %v745
  %v747 = vrot.slane %v746, 1
  %v748 = vmax.f32 %v746, %v747
  %v749 = vsel %vm552, %v604, -inf
  %v750 = vrot.slane %v749, 4
  %v751 = vmax.f32 %v749, %v750
  %v752 = vrot.slane %v751, 2
  %v753 = vmax.f32 %v751, %v752
  %v754 = vrot.slane %v753, 1
  %v755 = vmax.f32 %v753, %v754
  %v756 = vsel %vm685, %v605, -inf
  %v757 = vrot.slane %v756, 4
  %v758 = vmax.f32 %v756, %v757
  %v759 = vrot.slane %v758, 2
  %v760 = vmax.f32 %v758, %v759
  %v761 = vrot.slane %v760, 1
  %v762 = vmax.f32 %v760, %v761
  %v763 = vsel %vm552, %v607, -inf
  %v764 = vrot.slane %v763, 4
  %v765 = vmax.f32 %v763, %v764
  %v766 = vrot.slane %v765, 2
  %v767 = vmax.f32 %v765, %v766
  %v768 = vrot.slane %v767, 1
  %v769 = vmax.f32 %v767, %v768
  %v770 = vsel %vm685, %v608, -inf
  %v771 = vrot.slane %v770, 4
  %v772 = vmax.f32 %v770, %v771
  %v773 = vrot.slane %v772, 2
  %v774 = vmax.f32 %v772, %v773
  %v775 = vrot.slane %v774, 1
  %v776 = vmax.f32 %v774, %v775
  %v777 = vsel %vm552, %v610, -inf
  %v778 = vrot.slane %v777, 4
  %v779 = vmax.f32 %v777, %v778
  %v780 = vrot.slane %v779, 2
  %v781 = vmax.f32 %v779, %v780
  %v782 = vrot.slane %v781, 1
  %v783 = vmax.f32 %v781, %v782
  %v784 = vsel %vm685, %v611, -inf
  %v785 = vrot.slane %v784, 4
  %v786 = vmax.f32 %v784, %v785
  %v787 = vrot.slane %v786, 2
  %v788 = vmax.f32 %v786, %v787
  %v789 = vrot.slane %v788, 1
  %v790 = vmax.f32 %v788, %v789
  %v791 = vsel %vm552, %v613, -inf
  %v792 = vrot.slane %v791, 4
  %v793 = vmax.f32 %v791, %v792
  %v794 = vrot.slane %v793, 2
  %v795 = vmax.f32 %v793, %v794
  %v796 = vrot.slane %v795, 1
  %v797 = vmax.f32 %v795, %v796
  %v798 = vsel %vm685, %v614, -inf
  %v799 = vrot.slane %v798, 4
  %v800 = vmax.f32 %v798, %v799
  %v801 = vrot.slane %v800, 2
  %v802 = vmax.f32 %v800, %v801
  %v803 = vrot.slane %v802, 1
  %v804 = vmax.f32 %v802, %v803
  %v805 = vsel %vm552, %v616, -inf
  %v806 = vrot.slane %v805, 4
  %v807 = vmax.f32 %v805, %v806
  %v808 = vrot.slane %v807, 2
  %v809 = vmax.f32 %v807, %v808
  %v810 = vrot.slane %v809, 1
  %v811 = vmax.f32 %v809, %v810
  %v812 = vsel %vm685, %v617, -inf
  %v813 = vrot.slane %v812, 4
  %v814 = vmax.f32 %v812, %v813
  %v815 = vrot.slane %v814, 2
  %v816 = vmax.f32 %v814, %v815
  %v817 = vrot.slane %v816, 1
  %v818 = vmax.f32 %v816, %v817
  %v819 = vsel %vm552, %v619, -inf
  %v820 = vrot.slane %v819, 4
  %v821 = vmax.f32 %v819, %v820
  %v822 = vrot.slane %v821, 2
  %v823 = vmax.f32 %v821, %v822
  %v824 = vrot.slane %v823, 1
  %v825 = vmax.f32 %v823, %v824
  %v826 = vsel %vm685, %v620, -inf
  %v827 = vrot.slane %v826, 4
  %v828 = vmax.f32 %v826, %v827
  %v829 = vrot.slane %v828, 2
  %v830 = vmax.f32 %v828, %v829
  %v831 = vrot.slane %v830, 1
  %v832 = vmax.f32 %v830, %v831
  %v833 = vsel %vm552, %v622, -inf
  %v834 = vrot.slane %v833, 4
  %v835 = vmax.f32 %v833, %v834
  %v836 = vrot.slane %v835, 2
  %v837 = vmax.f32 %v835, %v836
  %v838 = vrot.slane %v837, 1
  %v839 = vmax.f32 %v837, %v838
  %v840 = vsel %vm685, %v623, -inf
  %v841 = vrot.slane %v840, 4
  %v842 = vmax.f32 %v840, %v841
  %v843 = vrot.slane %v842, 2
  %v844 = vmax.f32 %v842, %v843
  %v845 = vrot.slane %v844, 1
  %v846 = vmax.f32 %v844, %v845
  %v847 = vsel %vm552, %v625, -inf
  %v848 = vrot.slane %v847, 4
  %v849 = vmax.f32 %v847, %v848
  %v850 = vrot.slane %v849, 2
  %v851 = vmax.f32 %v849, %v850
  %v852 = vrot.slane %v851, 1
  %v853 = vmax.f32 %v851, %v852
  %v854 = vsel %vm685, %v626, -inf
  %v855 = vrot.slane %v854, 4
  %v856 = vmax.f32 %v854, %v855
  %v857 = vrot.slane %v856, 2
  %v858 = vmax.f32 %v856, %v857
  %v859 = vrot.slane %v858, 1
  %v860 = vmax.f32 %v858, %v859
  %v861 = vsel %vm552, %v628, -inf
  %v862 = vrot.slane %v861, 4
  %v863 = vmax.f32 %v861, %v862
  %v864 = vrot.slane %v863, 2
  %v865 = vmax.f32 %v863, %v864
  %v866 = vrot.slane %v865, 1
  %v867 = vmax.f32 %v865, %v866
  %v868 = vsel %vm685, %v629, -inf
  %v869 = vrot.slane %v868, 4
  %v870 = vmax.f32 %v868, %v869
  %v871 = vrot.slane %v870, 2
  %v872 = vmax.f32 %v870, %v871
  %v873 = vrot.slane %v872, 1
  %v874 = vmax.f32 %v872, %v873
  %v875 = vsel %vm552, %v631, -inf
  %v876 = vrot.slane %v875, 4
  %v877 = vmax.f32 %v875, %v876
  %v878 = vrot.slane %v877, 2
  %v879 = vmax.f32 %v877, %v878
  %v880 = vrot.slane %v879, 1
  %v881 = vmax.f32 %v879, %v880
  %v882 = vsel %vm685, %v632, -inf
  %v883 = vrot.slane %v882, 4
  %v884 = vmax.f32 %v882, %v883
  %v885 = vrot.slane %v884, 2
  %v886 = vmax.f32 %v884, %v885
  %v887 = vrot.slane %v886, 1
  %v888 = vmax.f32 %v886, %v887
  %v889 = vsel %vm552, %v634, -inf
  %v890 = vrot.slane %v889, 4
  %v891 = vmax.f32 %v889, %v890
  %v892 = vrot.slane %v891, 2
  %v893 = vmax.f32 %v891, %v892
  %v894 = vrot.slane %v893, 1
  %v895 = vmax.f32 %v893, %v894
  %v896 = vsel %vm685, %v635, -inf
  %v897 = vrot.slane %v896, 4
  %v898 = vmax.f32 %v896, %v897
  %v899 = vrot.slane %v898, 2
  %v900 = vmax.f32 %v898, %v899
  %v901 = vrot.slane %v900, 1
  %v902 = vmax.f32 %v900, %v901
  %v903 = vsel %vm552, %v637, -inf
  %v904 = vrot.slane %v903, 4
  %v905 = vmax.f32 %v903, %v904
  %v906 = vrot.slane %v905, 2
  %v907 = vmax.f32 %v905, %v906
  %v908 = vrot.slane %v907, 1
  %v909 = vmax.f32 %v907, %v908
  %v910 = vsel %vm685, %v638, -inf
  %v911 = vrot.slane %v910, 4
  %v912 = vmax.f32 %v910, %v911
  %v913 = vrot.slane %v912, 2
  %v914 = vmax.f32 %v912, %v913
  %v915 = vrot.slane %v914, 1
  %v916 = vmax.f32 %v914, %v915
  %v917 = vsel %vm552, %v640, -inf
  %v918 = vrot.slane %v917, 4
  %v919 = vmax.f32 %v917, %v918
  %v920 = vrot.slane %v919, 2
  %v921 = vmax.f32 %v919, %v920
  %v922 = vrot.slane %v921, 1
  %v923 = vmax.f32 %v921, %v922
  %v924 = vsel %vm685, %v641, -inf
  %v925 = vrot.slane %v924, 4
  %v926 = vmax.f32 %v924, %v925
  %v927 = vrot.slane %v926, 2
  %v928 = vmax.f32 %v926, %v927
  %v929 = vrot.slane %v928, 1
  %v930 = vmax.f32 %v928, %v929
  %967 = vrot.lane.b32.xlu0 %v684, 120
  %v968 = vpop.permute.xlu0 %967
  %969 = vrot.lane.b32.xlu0 %v692, 120
  %v970 = vpop.permute.xlu0 %969
  %971 = vrot.lane.b32.xlu0 %v699, 120
  %v972 = vpop.permute.xlu0 %971
  %973 = vrot.lane.b32.xlu0 %v706, 120
  %v974 = vpop.permute.xlu0 %973
  %975 = vrot.lane.b32.xlu0 %v713, 120
  %v976 = vpop.permute.xlu0 %975
  %977 = vrot.lane.b32.xlu0 %v720, 120
  %v978 = vpop.permute.xlu0 %977
  %979 = vrot.lane.b32.xlu0 %v727, 120
  %v980 = vpop.permute.xlu0 %979
  %981 = vrot.lane.b32.xlu0 %v734, 120
  %v982 = vpop.permute.xlu0 %981
  %983 = vrot.lane.b32.xlu0 %v741, 120
  %v984 = vpop.permute.xlu0 %983
  %985 = vrot.lane.b32.xlu0 %v748, 120
  %v986 = vpop.permute.xlu0 %985
  %987 = vrot.lane.b32.xlu0 %v755, 120
  %v988 = vpop.permute.xlu0 %987
  %989 = vrot.lane.b32.xlu0 %v762, 120
  %v990 = vpop.permute.xlu0 %989
  %991 = vrot.lane.b32.xlu0 %v769, 120
  %v992 = vpop.permute.xlu0 %991
  %993 = vrot.lane.b32.xlu0 %v776, 120
  %v994 = vpop.permute.xlu0 %993
  %995 = vrot.lane.b32.xlu0 %v783, 120
  %v996 = vpop.permute.xlu0 %995
  %997 = vrot.lane.b32.xlu0 %v790, 120
  %v998 = vpop.permute.xlu0 %997
  %999 = vrot.lane.b32.xlu0 %v797, 120
  %v1000 = vpop.permute.xlu0 %999
  %1001 = vrot.lane.b32.xlu0 %v804, 120
  %v1002 = vpop.permute.xlu0 %1001
  %1003 = vrot.lane.b32.xlu0 %v811, 120
  %v1004 = vpop.permute.xlu0 %1003
  %1005 = vrot.lane.b32.xlu0 %v818, 120
  %v1006 = vpop.permute.xlu0 %1005
  %1007 = vrot.lane.b32.xlu0 %v825, 120
  %v1008 = vpop.permute.xlu0 %1007
  %1009 = vrot.lane.b32.xlu0 %v832, 120
  %v1010 = vpop.permute.xlu0 %1009
  %1011 = vrot.lane.b32.xlu0 %v839, 120
  %v1012 = vpop.permute.xlu0 %1011
  %1013 = vrot.lane.b32.xlu0 %v846, 120
  %v1014 = vpop.permute.xlu0 %1013
  %1015 = vrot.lane.b32.xlu0 %v853, 120
  %v1016 = vpop.permute.xlu0 %1015
  %1017 = vrot.lane.b32.xlu0 %v860, 120
  %v1018 = vpop.permute.xlu0 %1017
  %1019 = vrot.lane.b32.xlu0 %v867, 120
  %v1020 = vpop.permute.xlu0 %1019
  %1021 = vrot.lane.b32.xlu0 %v874, 120
  %v1022 = vpop.permute.xlu0 %1021
  %1023 = vrot.lane.b32.xlu0 %v881, 120
  %v1024 = vpop.permute.xlu0 %1023
  %1025 = vrot.lane.b32.xlu0 %v888, 120
  %v1026 = vpop.permute.xlu0 %1025
  %1027 = vrot.lane.b32.xlu0 %v895, 120
  %v1028 = vpop.permute.xlu0 %1027
  %1029 = vrot.lane.b32.xlu0 %v902, 120
  %v1030 = vpop.permute.xlu0 %1029
  %1031 = vrot.lane.b32.xlu0 %v909, 120
  %v1032 = vpop.permute.xlu0 %1031
  %1033 = vrot.lane.b32.xlu0 %v916, 120
  %v1034 = vpop.permute.xlu0 %1033
  %1035 = vrot.lane.b32.xlu0 %v923, 120
  %v1036 = vpop.permute.xlu0 %1035
  %1037 = vrot.lane.b32.xlu0 %v930, 120
  %v1038 = vpop.permute.xlu0 %1037
  %vm1039 = vcmask 982016
  %v1040 = vsel %vm1039, %v968, %v970
  %v1041 = vsel %vm1039, %v972, %v974
  %v1042 = vsel %vm1039, %v976, %v978
  %v1043 = vsel %vm1039, %v980, %v982
  %v1044 = vsel %vm1039, %v984, %v986
  %v1045 = vsel %vm1039, %v988, %v990
  %v1046 = vsel %vm1039, %v992, %v994
  %v1047 = vsel %vm1039, %v996, %v998
  %v1048 = vsel %vm1039, %v1000, %v1002
  %v1049 = vsel %vm1039, %v1004, %v1006
  %v1050 = vsel %vm1039, %v1008, %v1010
  %v1051 = vsel %vm1039, %v1012, %v1014
  %v1052 = vsel %vm1039, %v1016, %v1018
  %v1053 = vsel %vm1039, %v1020, %v1022
  %v1054 = vsel %vm1039, %v1024, %v1026
  %v1055 = vsel %vm1039, %v1028, %v1030
  %v1056 = vsel %vm1039, %v1032, %v1034
  %v1057 = vsel %vm1039, %v1036, %v1038
  %v1094 = vmax.f32 %v684, %v1040
  %v1095 = vmax.f32 %v692, %v970
  %v1096 = vmax.f32 %v699, %v1041
  %v1097 = vmax.f32 %v706, %v974
  %v1098 = vmax.f32 %v713, %v1042
  %v1099 = vmax.f32 %v720, %v978
  %v1100 = vmax.f32 %v727, %v1043
  %v1101 = vmax.f32 %v734, %v982
  %v1102 = vmax.f32 %v741, %v1044
  %v1103 = vmax.f32 %v748, %v986
  %v1104 = vmax.f32 %v755, %v1045
  %v1105 = vmax.f32 %v762, %v990
  %v1106 = vmax.f32 %v769, %v1046
  %v1107 = vmax.f32 %v776, %v994
  %v1108 = vmax.f32 %v783, %v1047
  %v1109 = vmax.f32 %v790, %v998
  %v1110 = vmax.f32 %v797, %v1048
  %v1111 = vmax.f32 %v804, %v1002
  %v1112 = vmax.f32 %v811, %v1049
  %v1113 = vmax.f32 %v818, %v1006
  %v1114 = vmax.f32 %v825, %v1050
  %v1115 = vmax.f32 %v832, %v1010
  %v1116 = vmax.f32 %v839, %v1051
  %v1117 = vmax.f32 %v846, %v1014
  %v1118 = vmax.f32 %v853, %v1052
  %v1119 = vmax.f32 %v860, %v1018
  %v1120 = vmax.f32 %v867, %v1053
  %v1121 = vmax.f32 %v874, %v1022
  %v1122 = vmax.f32 %v881, %v1054
  %v1123 = vmax.f32 %v888, %v1026
  %v1124 = vmax.f32 %v895, %v1055
  %v1125 = vmax.f32 %v902, %v1030
  %v1126 = vmax.f32 %v909, %v1056
  %v1127 = vmax.f32 %v916, %v1034
  %v1128 = vmax.f32 %v923, %v1057
  %v1129 = vmax.f32 %v930, %v1038
  %v1166 = vrot.slane %v1096, 7
  %vm1167 = vcmask 1041409
  %v1168 = vsel %vm1167, %v1166, %v1094
  %v1169 = vrot.slane %v1098, 6
  %vm1170 = vcmask 1042434
  %v1171 = vsel %vm1170, %v1169, %v1168
  %v1172 = vrot.slane %v1100, 5
  %vm1173 = vcmask 1043459
  %v1174 = vsel %vm1173, %v1172, %v1171
  %v1175 = vrot.slane %v1102, 4
  %vm1176 = vcmask 1044484
  %v1177 = vsel %vm1176, %v1175, %v1174
  %v1178 = vrot.slane %v1104, 3
  %vm1179 = vcmask 1045509
  %v1180 = vsel %vm1179, %v1178, %v1177
  %v1181 = vrot.slane %v1106, 2
  %vm1182 = vcmask 1046534
  %v1183 = vsel %vm1182, %v1181, %v1180
  %v1184 = vrot.slane %v1108, 1
  %vm1185 = vcmask 1047559
  %v1186 = vsel %vm1185, %v1184, %v1183
  %v1187 = vrot.slane %v1097, 7
  %v1188 = vsel %vm1167, %v1187, %v1095
  %v1189 = vrot.slane %v1099, 6
  %v1190 = vsel %vm1170, %v1189, %v1188
  %v1191 = vrot.slane %v1101, 5
  %v1192 = vsel %vm1173, %v1191, %v1190
  %v1193 = vrot.slane %v1103, 4
  %v1194 = vsel %vm1176, %v1193, %v1192
  %v1195 = vrot.slane %v1105, 3
  %v1196 = vsel %vm1179, %v1195, %v1194
  %v1197 = vrot.slane %v1107, 2
  %v1198 = vsel %vm1182, %v1197, %v1196
  %v1199 = vrot.slane %v1109, 1
  %v1200 = vsel %vm1185, %v1199, %v1198
  %v1201 = vrot.slane %v1114, 7
  %v1202 = vsel %vm1167, %v1201, %v1112
  %v1203 = vrot.slane %v1116, 6
  %v1204 = vsel %vm1170, %v1203, %v1202
  %v1205 = vrot.slane %v1118, 5
  %v1206 = vsel %vm1173, %v1205, %v1204
  %v1207 = vrot.slane %v1120, 4
  %v1208 = vsel %vm1176, %v1207, %v1206
  %v1209 = vrot.slane %v1122, 3
  %v1210 = vsel %vm1179, %v1209, %v1208
  %v1211 = vrot.slane %v1124, 2
  %v1212 = vsel %vm1182, %v1211, %v1210
  %v1213 = vrot.slane %v1126, 1
  %v1214 = vsel %vm1185, %v1213, %v1212
  %v1215 = vrot.slane %v1115, 7
  %v1216 = vsel %vm1167, %v1215, %v1113
  %v1217 = vrot.slane %v1117, 6
  %v1218 = vsel %vm1170, %v1217, %v1216
  %v1219 = vrot.slane %v1119, 5
  %v1220 = vsel %vm1173, %v1219, %v1218
  %v1221 = vrot.slane %v1121, 4
  %v1222 = vsel %vm1176, %v1221, %v1220
  %v1223 = vrot.slane %v1123, 3
  %v1224 = vsel %vm1179, %v1223, %v1222
  %v1225 = vrot.slane %v1125, 2
  %v1226 = vsel %vm1182, %v1225, %v1224
  %v1227 = vrot.slane %v1127, 1
  %v1228 = vsel %vm1185, %v1227, %v1226
  %1237 = vst [vmem:[%s3] sm:$0xff] %v1186
  %1238 = vst.msk [vmem:[%s3 + $0x8] sm:$0xff] %vm19, %v1200
  %1239 = vst [vmem:[%s3 + $0x10] sm:$0x1] %v1110
  %vm1240 = vcmask 57344
  %1241 = vst.msk [vmem:[%s3 + $0x18] sm:$0x1] %vm1240, %v1111
  %1242 = vst [vmem:[%s3 + $0x20] sm:$0xff] %v1214
  %1243 = vst.msk [vmem:[%s3 + $0x28] sm:$0xff] %vm19, %v1228
  %1244 = vst [vmem:[%s3 + $0x30] sm:$0x1] %v1128
  %1245 = vst.msk [vmem:[%s3 + $0x38] sm:$0x1] %vm1240, %v1129
  // Predicated region
  $region14: #{tpu_custom_call.1} parent=0 // pred_check
    _
  $region15: #{tpu_custom_call.1} parent=0 // pred_check_branch
    %1247 = sbr.rel (0) target = $region17
  $region16: #{tpu_custom_call.1} parent=0 // pred_region
    _
  $region17: #{tpu_custom_call.1} parent=0 // pred_fallthru
    _
  // Predicated region
  $region18: #{tpu_custom_call.1} parent=0 // pred_check
    _
  $region19: #{tpu_custom_call.1} parent=0 // pred_check_branch
    %1249 = sbr.rel (0) target = $region21
  $region20: #{tpu_custom_call.1} parent=0 // pred_region
    _
  $region21: #{tpu_custom_call.1} parent=0 // pred_fallthru
    _

</llo_original>
